<compile_context>
chip_gen: v5e
topology: v5e:2x2
jax: 0.10.0
libtpu: 0.0.40
codegen_flags: <defaults>
</compile_context>

<pallas_src>
import jax
import jax.numpy as jnp
from jax.experimental import pallas as pl
from jax.experimental.pallas import tpu as pltpu


# ----------------------------------------------------------------------------
# Pallas kernel
# ----------------------------------------------------------------------------
def _mish_kernel(x_ref, o_ref):
    x = x_ref[...].astype(jnp.float32)
    # Numerically stable softplus: log(1 + exp(x)) = max(x, 0) + log(1 + exp(-|x|))
    sp = jnp.maximum(x, 0.0) + jnp.log(1.0 + jnp.exp(-jnp.abs(x)))
    o_ref[...] = (x * jnp.tanh(sp)).astype(o_ref.dtype)


# ----------------------------------------------------------------------------
# Wrapper: flatten -> lane-dense 2-D tiling -> pallas_call -> reshape back
# ----------------------------------------------------------------------------
def mish(x):
    orig_shape = x.shape
    orig_dtype = x.dtype
    total = x.size

    # Lane (last-dim) width: multiple of 128; use 512 for large inputs so
    # stores are wide unmasked vst and DMAs are long.
    lane = 512 if total >= 512 * 256 else 128
    rows = pl.cdiv(total, lane)

    # Row-tile: 256 rows (x 512 lanes x 4B = 512 KiB/tile, comfortably inside
    # VMEM with double-buffering on all of v5e/v6e/v7x).  For tiny inputs use
    # the smallest power-of-two >= rows (>= 8 to satisfy the (8,128) rule).
    block_rows = 256
    if rows < block_rows:
        block_rows = max(8, int(pl.next_power_of_2(rows)))
    rows_padded = pl.cdiv(rows, block_rows) * block_rows

    flat = x.reshape(-1)
    pad = rows_padded * lane - total
    if pad:
        flat = jnp.concatenate([flat, jnp.zeros((pad,), orig_dtype)])
    x2d = flat.reshape(rows_padded, lane)

    grid = (rows_padded // block_rows,)
    bytes_per_elem = jnp.dtype(orig_dtype).itemsize
    cost = pl.CostEstimate(
        flops=6 * total,
        transcendentals=3 * total,                 # exp, log, tanh
        bytes_accessed=2 * total * bytes_per_elem, # read + write
    )

    out2d = pl.pallas_call(
        _mish_kernel,
        out_shape=jax.ShapeDtypeStruct((rows_padded, lane), orig_dtype),
        grid=grid,
        in_specs=[pl.BlockSpec((block_rows, lane), lambda i: (i, 0))],
        out_specs=pl.BlockSpec((block_rows, lane), lambda i: (i, 0)),
        compiler_params=pltpu.CompilerParams(
            dimension_semantics=("parallel",),
        ),
        cost_estimate=cost,
    )(x2d)

    out = out2d.reshape(-1)
    if pad:
        out = out[:total]
    return out.reshape(orig_shape)


# ----------------------------------------------------------------------------
# Pure-JAX reference (for correctness check)
# ----------------------------------------------------------------------------
def ref_mish(x):
    return x * jnp.tanh(jax.nn.softplus(x))


# ----------------------------------------------------------------------------
if __name__ == "__main__":
    key = jax.random.PRNGKey(0)
    k1, k2 = jax.random.split(key)

    # Small NCHW tensor consistent with usage inside the ViT/GCN model.
    x = 3.0 * jax.random.normal(k1, (2, 4, 16, 16), jnp.float32)
    y = jax.block_until_ready(mish(x))
    r = ref_mish(x)
    assert y.shape == x.shape, y.shape
    assert jnp.allclose(y, r, atol=1e-5, rtol=1e-5), "mish mismatch (small case)"

    # A larger case exercising the 512-lane / 256-row tiling path + padding.
    x2 = 2.0 * jax.random.normal(k2, (4, 64, 33, 33), jnp.float32)
    y2 = jax.block_until_ready(mish(x2))
    r2 = ref_mish(x2)
    assert y2.shape == x2.shape, y2.shape
    assert jnp.allclose(y2, r2, atol=1e-5, rtol=1e-5), "mish mismatch (large case)"

    print("KERNEL_OK")
</pallas_src>

<mosaic_0001>
module attributes {stable_mosaic.version = 11 : i64} {
  func.func @_mish_kernel(%arg0: i32, %arg1: memref<16x128xf32, #tpu.memory_space<vmem>>, %arg2: memref<16x128xf32, #tpu.memory_space<vmem>>) attributes {dimension_semantics = [#tpu.dimension_semantics<parallel>], iteration_bounds = array<i64: 1>, scalar_prefetch = 0 : i64, scratch_operands = 0 : i64, tpu.core_type = #tpu.core_type<tc>, window_params = [{transform_indices = @transform_0, window_bounds = array<i64: 16, 128>}, {transform_indices = @transform_1, window_bounds = array<i64: 16, 128>}]} {
    %c0 = arith.constant 0 : index
    %c0_0 = arith.constant 0 : index
    %0 = vector.load %arg1[%c0, %c0_0] : memref<16x128xf32, #tpu.memory_space<vmem>>, vector<16x128xf32>
    %cst = arith.constant 0.000000e+00 : f32
    %1 = vector.broadcast %cst : f32 to vector<16x128xf32>
    %2 = arith.maximumf %0, %1 : vector<16x128xf32>
    %3 = math.absf %0 : vector<16x128xf32>
    %cst_1 = arith.constant 0.000000e+00 : f32
    %4 = vector.broadcast %cst_1 : f32 to vector<16x128xf32>
    %5 = arith.subf %4, %3 : vector<16x128xf32>
    %6 = math.exp %5 : vector<16x128xf32>
    %cst_2 = arith.constant 1.000000e+00 : f32
    %7 = vector.broadcast %cst_2 : f32 to vector<16x128xf32>
    %8 = arith.addf %7, %6 : vector<16x128xf32>
    %9 = math.log %8 : vector<16x128xf32>
    %10 = arith.addf %2, %9 : vector<16x128xf32>
    %11 = math.tanh %10 : vector<16x128xf32>
    %12 = arith.mulf %0, %11 : vector<16x128xf32>
    %c0_3 = arith.constant 0 : index
    %c0_4 = arith.constant 0 : index
    %13 = vector.load %arg2[%c0_3, %c0_4] : memref<16x128xf32, #tpu.memory_space<vmem>>, vector<16x128xf32>
    tpu.vector_store %arg2[%c0_3, %c0_4], %12 {strides = array<i32>} : memref<16x128xf32, #tpu.memory_space<vmem>>, vector<16x128xf32>,
    return
  }
  func.func @transform_0(%arg0: i32) -> (i32, i32) {
    %c0_i32 = arith.constant 0 : i32
    %c0_i32_0 = arith.constant 0 : i32
    return %arg0, %c0_i32 : i32, i32
  }
  func.func @transform_1(%arg0: i32) -> (i32, i32) {
    %c0_i32 = arith.constant 0 : i32
    %c0_i32_0 = arith.constant 0 : i32
    return %arg0, %c0_i32 : i32, i32
  }
}

</mosaic_0001>

<llo_original>
// kernel: tpu_custom_call.1
$region0: #{tpu_custom_call.1}
  #allocation0 [shape = 'u32[]', space=smem, size = 0x4, offset = 0x4, fixed_abs, tag = 'smem constant byte address 0x4 - core index']
  #allocation1 [shape = 'u32[72,128]{1,0:T(1,128)}', space=vmem, size = 0x9000, scoped, tag = 'internal scratch']
  %s0 = inlined_call_operand.hbm [shape: f32[16,128], index: 0, kind: input, shape index: {}]
  %s1 = inlined_call_operand.hbm [shape: f32[16,128], index: 1, kind: output, shape index: {}]
  %s2 = sld [smem:[#allocation0]]
  $region18: #{tpu_custom_call.1} parent=0
    _
  %s4 = ssub.s32 1, %s2
  %s5 = scalar_select 0, %s4, %s2
  $region1: #{tpu_custom_call.1} parent=0
    #allocation2 [shape = 'u8[8192]{0}', space=vmem, size = 0x2000, scoped, tag = 'input window, operand 0, single buffered']
    #allocation3 [shape = 's32[1]{0}', space=sflag, size = 0x4, scoped, tag = 'scoped memory for tpu_custom_call.1']
    #allocation4 [shape = 's32[1]{0}', space=sflag, size = 0x4, scoped, tag = 'scoped memory for tpu_custom_call.1']
    #allocation5 [shape = 'u8[8192]{0}', space=vmem, size = 0x2000, scoped, tag = 'output window, operand 0, single buffered']
    %6 = vsyncpa [#allocation3], 0
    %7 = vsyncpa [#allocation4], 0
    // Predicated region
    $region2: #{tpu_custom_call.1} parent=1 // pred_check
      _
    $region3: #{tpu_custom_call.1} parent=1 // pred_check_branch
      %9 = sbr.rel (0) target = $region5
    $region4: #{tpu_custom_call.1} parent=1 // pred_region
      %11 = vsyncadd [#allocation3], 0
      %s12 = sshll.u32 %s0, 4
      %s13 = int_to_ptr.hbm [resolvable:$true] %s12
      %s14 = sshll.u32 [#allocation2], 4
      %s15 = int_to_ptr.vmem [resolvable:$true] %s14
      %20 = dma.hbm_to_vmem [thread:$0]  %s13, 256, %s15, [#allocation3], 128, 128, 8
    $region5: #{tpu_custom_call.1} parent=1 // pred_fallthru
      _
    // Predicated region
    $region6: #{tpu_custom_call.1} parent=1 // pred_check
      _
    $region7: #{tpu_custom_call.1} parent=1 // pred_check_branch
      %22 = sbr.rel (0) target = $region9
    $region8: #{tpu_custom_call.1} parent=1 // pred_region
      %24 = dma.done [#allocation3], 256
    $region9: #{tpu_custom_call.1} parent=1 // pred_fallthru
      _
    %v25 = vld [vmem:[#allocation2] sm:$0xff]
    %v26 = vld [vmem:[#allocation2 + $0x8] sm:$0xff]
    %v27 = vmax.f32 %v25, 0.0
    %v28 = vmax.f32 %v26, 0.0
    %v29 = vand.u32 2147483647, %v25
    %v30 = vand.u32 2147483647, %v26
    %v31 = vsub.f32 0.0, %v29
    %v32 = vsub.f32 0.0, %v30
    %v33 = vmul.f32 %v31, 1.442695
    %v34 = vpow.pop %v33
    %v35 = vmul.f32 %v32, 1.442695
    %v36 = vpow.pop %v35
    %v37 = vadd.f32 %v34, 1.0
    %v38 = vadd.f32 %v36, 1.0
    %v39 = vlog2.pop %v37
    %v40 = vmul.f32 %v39, 0.6931472
    %v41 = vlog2.pop %v38
    %v42 = vmul.f32 %v41, 0.6931472
    %v43 = vadd.f32 %v27, %v40
    %v44 = vadd.f32 %v28, %v42
    %v45 = vtanh.pop %v43
    %v46 = vtanh.pop %v44
    %v47 = vmul.f32 %v25, %v45
    %v48 = vmul.f32 %v26, %v46
    %49 = vst [vmem:[#allocation5] sm:$0xff] %v47
    %50 = vst [vmem:[#allocation5 + $0x8] sm:$0xff] %v48
    // Predicated region
    $region10: #{tpu_custom_call.1} parent=1 // pred_check
      _
    $region11: #{tpu_custom_call.1} parent=1 // pred_check_branch
      %52 = sbr.rel (0) target = $region13
    $region12: #{tpu_custom_call.1} parent=1 // pred_region
      %54 = vsyncadd [#allocation4], 0
      %s55 = sshll.u32 [#allocation5], 4
      %s56 = int_to_ptr.vmem [resolvable:$true] %s55
      %s57 = sshll.u32 %s1, 4
      %s58 = int_to_ptr.hbm [resolvable:$true] %s57
      %63 = dma.vmem_to_hbm [thread:$0]  %s56, 256, %s58, [#allocation4], 128, 128, 8
    $region13: #{tpu_custom_call.1} parent=1 // pred_fallthru
      _
    // Predicated region
    $region14: #{tpu_custom_call.1} parent=1 // pred_check
      _
    $region15: #{tpu_custom_call.1} parent=1 // pred_check_branch
      %65 = sbr.rel (0) target = $region17
    $region16: #{tpu_custom_call.1} parent=1 // pred_region
      %67 = dma.done [#allocation4], 256
    $region17: #{tpu_custom_call.1} parent=1 // pred_fallthru
      _
    %68 = vsyncpa [#allocation3], 1
    %69 = vsyncpa [#allocation4], 1

</llo_original>
